<compile_context>
chip_gen: v5e
topology: v5e:2x2
jax: 0.10.0
libtpu: 0.0.40
codegen_flags: <defaults>
</compile_context>

<pallas_src>
import functools

import jax
import jax.numpy as jnp
from jax.experimental import pallas as pl
from jax.experimental.pallas import tpu as pltpu


# ----------------------------------------------------------------------------
# Kernel
# ----------------------------------------------------------------------------
def _unary_kernel(x_ref, o_ref, *, negative_slope):
    x = x_ref[...]
    # leaky_relu(x) = x if x >= 0 else negative_slope * x
    o_ref[...] = jnp.where(x >= 0, x, negative_slope * x)


def _leaky_relu_jnp(x, negative_slope):
    # Plain-XLA path (tiny inputs, ragged tails, non-float dtypes).
    return jnp.where(x >= 0, x, negative_slope * x)


_LANE_CHOICES = (8192, 4096, 2048, 1024, 512, 256, 128)
_TINY_BYTES = 256 << 10  # below this, skip the pallas_call entirely


def _sublane_multiple(dtype):
    # Sublane packing: 8 rows per vreg tile for 32-bit, 16 for bf16/fp16.
    itemsize = jnp.dtype(dtype).itemsize
    return max(8, 32 // itemsize)


def _chip_config():
    """Heuristic per-generation tuning: (two_tensorcores, target_tile_bytes)."""
    try:
        kind = jax.devices()[0].device_kind.lower()
    except Exception:  # pragma: no cover - defensive (e.g. interpret mode)
        kind = ""
    if "v7" in kind or "7x" in kind:
        return True, 8 << 20          # v7x: 2 TCs, 3.2 TB/s HBM -> 8 MiB tiles
    if "v6" in kind:
        return False, 8 << 20         # v6e: 1 TC, cheap to use 8 MiB tiles
    if "v4" in kind:
        return True, 4 << 20          # v4 megacore: 2 TCs
    return False, 4 << 20             # v5e / unknown: conservative


def _choose_block_rows(rows, lanes, itemsize, sub, target_tile_bytes, two_tc):
    if rows <= sub:
        return rows  # single full-extent block (no grid overhead)

    tgt_rows = max(sub, (target_tile_bytes // (lanes * itemsize)) // sub * sub)
    br = min((rows // sub) * sub, tgt_rows)
    grid_rows = pl.cdiv(rows, br)

    if two_tc:
        if grid_rows == 1:
            # Whole tensor fits in one tile: split in two so both TensorCores
            # stream from HBM in parallel.
            half = pl.cdiv(rows, 2)
            br = max(sub, pl.cdiv(half, sub) * sub)
        elif grid_rows % 2 == 1:
            # Keep the block count even so the 2 TCs stay balanced.
            even_grid = grid_rows + 1
            br = max(sub, pl.cdiv(pl.cdiv(rows, even_grid), sub) * sub)
    return br


def _run_2d(x2d, *, negative_slope, block_rows, inplace, vmem_limit_bytes):
    rows, lanes = x2d.shape
    kernel = functools.partial(_unary_kernel, negative_slope=negative_slope)
    grid_rows = pl.cdiv(rows, block_rows)
    return pl.pallas_call(
        kernel,
        out_shape=jax.ShapeDtypeStruct((rows, lanes), x2d.dtype),
        grid=(grid_rows,),
        in_specs=[pl.BlockSpec((block_rows, lanes), lambda i: (i, 0))],
        out_specs=pl.BlockSpec((block_rows, lanes), lambda i: (i, 0)),
        input_output_aliases={0: 0} if inplace else {},
        compiler_params=pltpu.CompilerParams(
            dimension_semantics=("parallel",),
            vmem_limit_bytes=vmem_limit_bytes,
        ),
    )(x2d)


# ----------------------------------------------------------------------------
# Wrapper (== ModelDirect.forward with operator=leaky_relu, kwargs={'negative_slope': 0.1})
# ----------------------------------------------------------------------------
def model_direct_forward(x, *, negative_slope=0.1, inplace=False,
                         target_tile_bytes=None):
    """Applies the unary operator (leaky_relu with kwargs) via a Pallas kernel.

    Set inplace=True only when the caller donates `x` (e.g. jit donate_argnums);
    otherwise XLA inserts a defensive copy and the alias hurts, so it is off by
    default.
    """
    dtype = x.dtype

    # Integer / bool dtypes: the slope multiply would promote; keep them on the
    # plain-XLA path with identical semantics.
    if not jnp.issubdtype(dtype, jnp.floating):
        return _leaky_relu_jnp(x, negative_slope)

    itemsize = jnp.dtype(dtype).itemsize
    total = x.size

    # Tiny-input bypass: launch overhead dominates below ~256 KiB.
    if total * itemsize < _TINY_BYTES:
        return _leaky_relu_jnp(x, negative_slope)

    two_tc, default_tile = _chip_config()
    if target_tile_bytes is None:
        target_tile_bytes = default_tile

    orig_shape = x.shape
    sub = _sublane_multiple(dtype)
    flat = x.reshape(-1)

    # Pick the widest lane dimension (multiple of 128) that divides the tensor.
    lanes = next((L for L in _LANE_CHOICES if total % L == 0), None)

    if lanes is None:
        # Ragged: run the 128-divisible prefix through the kernel, compute the
        # tiny (< 128 element) tail with plain jnp — no full-tensor pad/slice.
        lanes = 128
        main = (total // lanes) * lanes
        head = flat[:main].reshape(main // lanes, lanes)
        rows = head.shape[0]
        br = _choose_block_rows(rows, lanes, itemsize, sub,
                                target_tile_bytes, two_tc)
        tile_bytes = br * lanes * itemsize
        vmem_limit = int(min(40 << 20, max(32 << 20, 5 * tile_bytes)))
        head_out = _run_2d(head, negative_slope=negative_slope, block_rows=br,
                           inplace=False, vmem_limit_bytes=vmem_limit)
        tail_out = _leaky_relu_jnp(flat[main:], negative_slope)
        return jnp.concatenate([head_out.reshape(-1), tail_out]).reshape(orig_shape)

    x2d = flat.reshape(total // lanes, lanes)
    rows = x2d.shape[0]
    br = _choose_block_rows(rows, lanes, itemsize, sub, target_tile_bytes, two_tc)

    tile_bytes = br * lanes * itemsize
    # in + out, double-buffered, plus headroom; >= 32 MiB so v5e's 16 MiB
    # default scoped VMEM never forces smaller blocks, capped at 40 MiB
    # (comfortably inside v7x's 64 MiB physical VMEM).
    vmem_limit = int(min(40 << 20, max(32 << 20, 5 * tile_bytes)))

    out2d = _run_2d(x2d, negative_slope=negative_slope, block_rows=br,
                    inplace=inplace, vmem_limit_bytes=vmem_limit)
    return out2d.reshape(orig_shape)


# ----------------------------------------------------------------------------
# Self-test
# ----------------------------------------------------------------------------
if __name__ == "__main__":
    key = jax.random.PRNGKey(0)
    k0, k1, k2 = jax.random.split(key, 3)
    negative_slope = 0.1

    def ref_fn(a):
        return jnp.where(a >= 0, a, negative_slope * a)

    # 1) Small NCHW input matching the elementwise-unary test module
    #    (exercises the tiny-input bypass).
    x_small = jax.random.normal(k0, (2, 4, 16, 16), dtype=jnp.float32)
    out_small = jax.block_until_ready(
        model_direct_forward(x_small, negative_slope=negative_slope))
    assert out_small.shape == x_small.shape and out_small.dtype == x_small.dtype
    assert jnp.allclose(out_small, ref_fn(x_small), atol=1e-6, rtol=1e-6)

    # 2) Larger, lane-divisible input: exercises the Pallas kernel path.
    x_big = jax.random.normal(k1, (2, 4, 128, 128), dtype=jnp.float32)  # 512 KiB
    out_big = jax.block_until_ready(
        model_direct_forward(x_big, negative_slope=negative_slope))
    assert out_big.shape == x_big.shape and out_big.dtype == x_big.dtype
    assert jnp.allclose(out_big, ref_fn(x_big), atol=1e-6, rtol=1e-6)

    # 3) Ragged input (not divisible by 128): kernel on the prefix + jnp tail.
    x_rag = jax.random.normal(k2, (513, 257), dtype=jnp.float32)  # ~527 KiB
    out_rag = jax.block_until_ready(
        model_direct_forward(x_rag, negative_slope=negative_slope))
    assert out_rag.shape == x_rag.shape and out_rag.dtype == x_rag.dtype
    assert jnp.allclose(out_rag, ref_fn(x_rag), atol=1e-6, rtol=1e-6)

    print("KERNEL_OK")
</pallas_src>

<mosaic_0001>
module attributes {stable_mosaic.version = 11 : i64} {
  func.func @_unary_kernel(%arg0: i32, %arg1: memref<16x8192xf32, #tpu.memory_space<vmem>>, %arg2: memref<16x8192xf32, #tpu.memory_space<vmem>>) attributes {dimension_semantics = [#tpu.dimension_semantics<parallel>], iteration_bounds = array<i64: 1>, scalar_prefetch = 0 : i64, scratch_operands = 0 : i64, tpu.core_type = #tpu.core_type<tc>, window_params = [{transform_indices = @transform_0, window_bounds = array<i64: 16, 8192>}, {transform_indices = @transform_1, window_bounds = array<i64: 16, 8192>}]} {
    %c0 = arith.constant 0 : index
    %c0_0 = arith.constant 0 : index
    %0 = vector.load %arg1[%c0, %c0_0] : memref<16x8192xf32, #tpu.memory_space<vmem>>, vector<16x8192xf32>
    %cst = arith.constant 0.000000e+00 : f32
    %1 = vector.broadcast %cst : f32 to vector<16x8192xf32>
    %2 = arith.cmpf oge, %0, %1 : vector<16x8192xf32>
    %cst_1 = arith.constant 1.000000e-01 : f32
    %3 = vector.broadcast %cst_1 : f32 to vector<16x8192xf32>
    %4 = arith.mulf %3, %0 : vector<16x8192xf32>
    %5 = arith.select %2, %0, %4 : vector<16x8192xi1>, vector<16x8192xf32>
    %c0_2 = arith.constant 0 : index
    %c0_3 = arith.constant 0 : index
    %6 = vector.load %arg2[%c0_2, %c0_3] : memref<16x8192xf32, #tpu.memory_space<vmem>>, vector<16x8192xf32>
    tpu.vector_store %arg2[%c0_2, %c0_3], %5 {strides = array<i32>} : memref<16x8192xf32, #tpu.memory_space<vmem>>, vector<16x8192xf32>,
    return
  }
  func.func @transform_0(%arg0: i32) -> (i32, i32) {
    %c0_i32 = arith.constant 0 : i32
    %c0_i32_0 = arith.constant 0 : i32
    return %arg0, %c0_i32 : i32, i32
  }
  func.func @transform_1(%arg0: i32) -> (i32, i32) {
    %c0_i32 = arith.constant 0 : i32
    %c0_i32_0 = arith.constant 0 : i32
    return %arg0, %c0_i32 : i32, i32
  }
}

</mosaic_0001>

<llo_original>
// kernel: tpu_custom_call.1
$region0: #{tpu_custom_call.1}
  #allocation0 [shape = 'u32[]', space=smem, size = 0x4, offset = 0x4, fixed_abs, tag = 'smem constant byte address 0x4 - core index']
  #allocation1 [shape = 'u32[72,128]{1,0:T(1,128)}', space=vmem, size = 0x9000, scoped, tag = 'internal scratch']
  %s0 = inlined_call_operand.hbm [shape: f32[16,8192], index: 0, kind: input, shape index: {}]
  %s1 = inlined_call_operand.hbm [shape: f32[16,8192], index: 1, kind: output, shape index: {}]
  %s2 = sld [smem:[#allocation0]]
  $region18: #{tpu_custom_call.1} parent=0
    _
  %s4 = ssub.s32 1, %s2
  %s5 = scalar_select 0, %s4, %s2
  $region1: #{tpu_custom_call.1} parent=0
    #allocation2 [shape = 'u8[524288]{0}', space=vmem, size = 0x80000, scoped, tag = 'input window, operand 0, single buffered']
    #allocation3 [shape = 's32[1]{0}', space=sflag, size = 0x4, scoped, tag = 'scoped memory for tpu_custom_call.1']
    #allocation4 [shape = 's32[1]{0}', space=sflag, size = 0x4, scoped, tag = 'scoped memory for tpu_custom_call.1']
    #allocation5 [shape = 'u8[524288]{0}', space=vmem, size = 0x80000, scoped, tag = 'output window, operand 0, single buffered']
    %6 = vsyncpa [#allocation3], 0
    %7 = vsyncpa [#allocation4], 0
    // Predicated region
    $region2: #{tpu_custom_call.1} parent=1 // pred_check
      _
    $region3: #{tpu_custom_call.1} parent=1 // pred_check_branch
      %9 = sbr.rel (0) target = $region5
    $region4: #{tpu_custom_call.1} parent=1 // pred_region
      %11 = vsyncadd [#allocation3], 0
      %s12 = sshll.u32 %s0, 4
      %s13 = int_to_ptr.hbm [resolvable:$true] %s12
      %s14 = sshll.u32 [#allocation2], 4
      %s15 = int_to_ptr.vmem [resolvable:$true] %s14
      %20 = dma.hbm_to_vmem [thread:$0]  %s13, 16384, %s15, [#allocation3], 8192, 8192, 512
    $region5: #{tpu_custom_call.1} parent=1 // pred_fallthru
      _
    // Predicated region
    $region6: #{tpu_custom_call.1} parent=1 // pred_check
      _
    $region7: #{tpu_custom_call.1} parent=1 // pred_check_branch
      %22 = sbr.rel (0) target = $region9
    $region8: #{tpu_custom_call.1} parent=1 // pred_region
      %24 = dma.done [#allocation3], 16384
    $region9: #{tpu_custom_call.1} parent=1 // pred_fallthru
      _
    %v25 = vld [vmem:[#allocation2] sm:$0xff]
    %v26 = vld [vmem:[#allocation2 + $0x8] sm:$0xff]
    %v27 = vld [vmem:[#allocation2 + $0x10] sm:$0xff]
    %v28 = vld [vmem:[#allocation2 + $0x18] sm:$0xff]
    %v29 = vld [vmem:[#allocation2 + $0x20] sm:$0xff]
    %v30 = vld [vmem:[#allocation2 + $0x28] sm:$0xff]
    %v31 = vld [vmem:[#allocation2 + $0x30] sm:$0xff]
    %v32 = vld [vmem:[#allocation2 + $0x38] sm:$0xff]
    %v33 = vld [vmem:[#allocation2 + $0x40] sm:$0xff]
    %v34 = vld [vmem:[#allocation2 + $0x48] sm:$0xff]
    %v35 = vld [vmem:[#allocation2 + $0x50] sm:$0xff]
    %v36 = vld [vmem:[#allocation2 + $0x58] sm:$0xff]
    %v37 = vld [vmem:[#allocation2 + $0x60] sm:$0xff]
    %v38 = vld [vmem:[#allocation2 + $0x68] sm:$0xff]
    %v39 = vld [vmem:[#allocation2 + $0x70] sm:$0xff]
    %v40 = vld [vmem:[#allocation2 + $0x78] sm:$0xff]
    %v41 = vld [vmem:[#allocation2 + $0x80] sm:$0xff]
    %v42 = vld [vmem:[#allocation2 + $0x88] sm:$0xff]
    %v43 = vld [vmem:[#allocation2 + $0x90] sm:$0xff]
    %v44 = vld [vmem:[#allocation2 + $0x98] sm:$0xff]
    %v45 = vld [vmem:[#allocation2 + $0xa0] sm:$0xff]
    %v46 = vld [vmem:[#allocation2 + $0xa8] sm:$0xff]
    %v47 = vld [vmem:[#allocation2 + $0xb0] sm:$0xff]
    %v48 = vld [vmem:[#allocation2 + $0xb8] sm:$0xff]
    %v49 = vld [vmem:[#allocation2 + $0xc0] sm:$0xff]
    %v50 = vld [vmem:[#allocation2 + $0xc8] sm:$0xff]
    %v51 = vld [vmem:[#allocation2 + $0xd0] sm:$0xff]
    %v52 = vld [vmem:[#allocation2 + $0xd8] sm:$0xff]
    %v53 = vld [vmem:[#allocation2 + $0xe0] sm:$0xff]
    %v54 = vld [vmem:[#allocation2 + $0xe8] sm:$0xff]
    %v55 = vld [vmem:[#allocation2 + $0xf0] sm:$0xff]
    %v56 = vld [vmem:[#allocation2 + $0xf8] sm:$0xff]
    %v57 = vld [vmem:[#allocation2 + $0x100] sm:$0xff]
    %v58 = vld [vmem:[#allocation2 + $0x108] sm:$0xff]
    %v59 = vld [vmem:[#allocation2 + $0x110] sm:$0xff]
    %v60 = vld [vmem:[#allocation2 + $0x118] sm:$0xff]
    %v61 = vld [vmem:[#allocation2 + $0x120] sm:$0xff]
    %v62 = vld [vmem:[#allocation2 + $0x128] sm:$0xff]
    %v63 = vld [vmem:[#allocation2 + $0x130] sm:$0xff]
    %v64 = vld [vmem:[#allocation2 + $0x138] sm:$0xff]
    %v65 = vld [vmem:[#allocation2 + $0x140] sm:$0xff]
    %v66 = vld [vmem:[#allocation2 + $0x148] sm:$0xff]
    %v67 = vld [vmem:[#allocation2 + $0x150] sm:$0xff]
    %v68 = vld [vmem:[#allocation2 + $0x158] sm:$0xff]
    %v69 = vld [vmem:[#allocation2 + $0x160] sm:$0xff]
    %v70 = vld [vmem:[#allocation2 + $0x168] sm:$0xff]
    %v71 = vld [vmem:[#allocation2 + $0x170] sm:$0xff]
    %v72 = vld [vmem:[#allocation2 + $0x178] sm:$0xff]
    %v73 = vld [vmem:[#allocation2 + $0x180] sm:$0xff]
    %v74 = vld [vmem:[#allocation2 + $0x188] sm:$0xff]
    %v75 = vld [vmem:[#allocation2 + $0x190] sm:$0xff]
    %v76 = vld [vmem:[#allocation2 + $0x198] sm:$0xff]
    %v77 = vld [vmem:[#allocation2 + $0x1a0] sm:$0xff]
    %v78 = vld [vmem:[#allocation2 + $0x1a8] sm:$0xff]
    %v79 = vld [vmem:[#allocation2 + $0x1b0] sm:$0xff]
    %v80 = vld [vmem:[#allocation2 + $0x1b8] sm:$0xff]
    %v81 = vld [vmem:[#allocation2 + $0x1c0] sm:$0xff]
    %v82 = vld [vmem:[#allocation2 + $0x1c8] sm:$0xff]
    %v83 = vld [vmem:[#allocation2 + $0x1d0] sm:$0xff]
    %v84 = vld [vmem:[#allocation2 + $0x1d8] sm:$0xff]
    %v85 = vld [vmem:[#allocation2 + $0x1e0] sm:$0xff]
    %v86 = vld [vmem:[#allocation2 + $0x1e8] sm:$0xff]
    %v87 = vld [vmem:[#allocation2 + $0x1f0] sm:$0xff]
    %v88 = vld [vmem:[#allocation2 + $0x1f8] sm:$0xff]
    %v89 = vld [vmem:[#allocation2 + $0x200] sm:$0xff]
    %v90 = vld [vmem:[#allocation2 + $0x208] sm:$0xff]
    %v91 = vld [vmem:[#allocation2 + $0x210] sm:$0xff]
    %v92 = vld [vmem:[#allocation2 + $0x218] sm:$0xff]
    %v93 = vld [vmem:[#allocation2 + $0x220] sm:$0xff]
    %v94 = vld [vmem:[#allocation2 + $0x228] sm:$0xff]
    %v95 = vld [vmem:[#allocation2 + $0x230] sm:$0xff]
    %v96 = vld [vmem:[#allocation2 + $0x238] sm:$0xff]
    %v97 = vld [vmem:[#allocation2 + $0x240] sm:$0xff]
    %v98 = vld [vmem:[#allocation2 + $0x248] sm:$0xff]
    %v99 = vld [vmem:[#allocation2 + $0x250] sm:$0xff]
    %v100 = vld [vmem:[#allocation2 + $0x258] sm:$0xff]
    %v101 = vld [vmem:[#allocation2 + $0x260] sm:$0xff]
    %v102 = vld [vmem:[#allocation2 + $0x268] sm:$0xff]
    %v103 = vld [vmem:[#allocation2 + $0x270] sm:$0xff]
    %v104 = vld [vmem:[#allocation2 + $0x278] sm:$0xff]
    %v105 = vld [vmem:[#allocation2 + $0x280] sm:$0xff]
    %v106 = vld [vmem:[#allocation2 + $0x288] sm:$0xff]
    %v107 = vld [vmem:[#allocation2 + $0x290] sm:$0xff]
    %v108 = vld [vmem:[#allocation2 + $0x298] sm:$0xff]
    %v109 = vld [vmem:[#allocation2 + $0x2a0] sm:$0xff]
    %v110 = vld [vmem:[#allocation2 + $0x2a8] sm:$0xff]
    %v111 = vld [vmem:[#allocation2 + $0x2b0] sm:$0xff]
    %v112 = vld [vmem:[#allocation2 + $0x2b8] sm:$0xff]
    %v113 = vld [vmem:[#allocation2 + $0x2c0] sm:$0xff]
    %v114 = vld [vmem:[#allocation2 + $0x2c8] sm:$0xff]
    %v115 = vld [vmem:[#allocation2 + $0x2d0] sm:$0xff]
    %v116 = vld [vmem:[#allocation2 + $0x2d8] sm:$0xff]
    %v117 = vld [vmem:[#allocation2 + $0x2e0] sm:$0xff]
    %v118 = vld [vmem:[#allocation2 + $0x2e8] sm:$0xff]
    %v119 = vld [vmem:[#allocation2 + $0x2f0] sm:$0xff]
    %v120 = vld [vmem:[#allocation2 + $0x2f8] sm:$0xff]
    %v121 = vld [vmem:[#allocation2 + $0x300] sm:$0xff]
    %v122 = vld [vmem:[#allocation2 + $0x308] sm:$0xff]
    %v123 = vld [vmem:[#allocation2 + $0x310] sm:$0xff]
    %v124 = vld [vmem:[#allocation2 + $0x318] sm:$0xff]
    %v125 = vld [vmem:[#allocation2 + $0x320] sm:$0xff]
    %v126 = vld [vmem:[#allocation2 + $0x328] sm:$0xff]
    %v127 = vld [vmem:[#allocation2 + $0x330] sm:$0xff]
    %v128 = vld [vmem:[#allocation2 + $0x338] sm:$0xff]
    %v129 = vld [vmem:[#allocation2 + $0x340] sm:$0xff]
    %v130 = vld [vmem:[#allocation2 + $0x348] sm:$0xff]
    %v131 = vld [vmem:[#allocation2 + $0x350] sm:$0xff]
    %v132 = vld [vmem:[#allocation2 + $0x358] sm:$0xff]
    %v133 = vld [vmem:[#allocation2 + $0x360] sm:$0xff]
    %v134 = vld [vmem:[#allocation2 + $0x368] sm:$0xff]
    %v135 = vld [vmem:[#allocation2 + $0x370] sm:$0xff]
    %v136 = vld [vmem:[#allocation2 + $0x378] sm:$0xff]
    %v137 = vld [vmem:[#allocation2 + $0x380] sm:$0xff]
    %v138 = vld [vmem:[#allocation2 + $0x388] sm:$0xff]
    %v139 = vld [vmem:[#allocation2 + $0x390] sm:$0xff]
    %v140 = vld [vmem:[#allocation2 + $0x398] sm:$0xff]
    %v141 = vld [vmem:[#allocation2 + $0x3a0] sm:$0xff]
    %v142 = vld [vmem:[#allocation2 + $0x3a8] sm:$0xff]
    %v143 = vld [vmem:[#allocation2 + $0x3b0] sm:$0xff]
    %v144 = vld [vmem:[#allocation2 + $0x3b8] sm:$0xff]
    %v145 = vld [vmem:[#allocation2 + $0x3c0] sm:$0xff]
    %v146 = vld [vmem:[#allocation2 + $0x3c8] sm:$0xff]
    %v147 = vld [vmem:[#allocation2 + $0x3d0] sm:$0xff]
    %v148 = vld [vmem:[#allocation2 + $0x3d8] sm:$0xff]
    %v149 = vld [vmem:[#allocation2 + $0x3e0] sm:$0xff]
    %v150 = vld [vmem:[#allocation2 + $0x3e8] sm:$0xff]
    %v151 = vld [vmem:[#allocation2 + $0x3f0] sm:$0xff]
    %v152 = vld [vmem:[#allocation2 + $0x3f8] sm:$0xff]
    %vm153 = vcmp.ge.f32.partialorder %v25, 0.0
    %vm154 = vcmp.ge.f32.partialorder %v26, 0.0
    %vm155 = vcmp.ge.f32.partialorder %v27, 0.0
    %vm156 = vcmp.ge.f32.partialorder %v28, 0.0
    %vm157 = vcmp.ge.f32.partialorder %v29, 0.0
    %vm158 = vcmp.ge.f32.partialorder %v30, 0.0
    %vm159 = vcmp.ge.f32.partialorder %v31, 0.0
    %vm160 = vcmp.ge.f32.partialorder %v32, 0.0
    %vm161 = vcmp.ge.f32.partialorder %v33, 0.0
    %vm162 = vcmp.ge.f32.partialorder %v34, 0.0
    %vm163 = vcmp.ge.f32.partialorder %v35, 0.0
    %vm164 = vcmp.ge.f32.partialorder %v36, 0.0
    %vm165 = vcmp.ge.f32.partialorder %v37, 0.0
    %vm166 = vcmp.ge.f32.partialorder %v38, 0.0
    %vm167 = vcmp.ge.f32.partialorder %v39, 0.0
    %vm168 = vcmp.ge.f32.partialorder %v40, 0.0
    %vm169 = vcmp.ge.f32.partialorder %v41, 0.0
    %vm170 = vcmp.ge.f32.partialorder %v42, 0.0
    %vm171 = vcmp.ge.f32.partialorder %v43, 0.0
    %vm172 = vcmp.ge.f32.partialorder %v44, 0.0
    %vm173 = vcmp.ge.f32.partialorder %v45, 0.0
    %vm174 = vcmp.ge.f32.partialorder %v46, 0.0
    %vm175 = vcmp.ge.f32.partialorder %v47, 0.0
    %vm176 = vcmp.ge.f32.partialorder %v48, 0.0
    %vm177 = vcmp.ge.f32.partialorder %v49, 0.0
    %vm178 = vcmp.ge.f32.partialorder %v50, 0.0
    %vm179 = vcmp.ge.f32.partialorder %v51, 0.0
    %vm180 = vcmp.ge.f32.partialorder %v52, 0.0
    %vm181 = vcmp.ge.f32.partialorder %v53, 0.0
    %vm182 = vcmp.ge.f32.partialorder %v54, 0.0
    %vm183 = vcmp.ge.f32.partialorder %v55, 0.0
    %vm184 = vcmp.ge.f32.partialorder %v56, 0.0
    %vm185 = vcmp.ge.f32.partialorder %v57, 0.0
    %vm186 = vcmp.ge.f32.partialorder %v58, 0.0
    %vm187 = vcmp.ge.f32.partialorder %v59, 0.0
    %vm188 = vcmp.ge.f32.partialorder %v60, 0.0
    %vm189 = vcmp.ge.f32.partialorder %v61, 0.0
    %vm190 = vcmp.ge.f32.partialorder %v62, 0.0
    %vm191 = vcmp.ge.f32.partialorder %v63, 0.0
    %vm192 = vcmp.ge.f32.partialorder %v64, 0.0
    %vm193 = vcmp.ge.f32.partialorder %v65, 0.0
    %vm194 = vcmp.ge.f32.partialorder %v66, 0.0
    %vm195 = vcmp.ge.f32.partialorder %v67, 0.0
    %vm196 = vcmp.ge.f32.partialorder %v68, 0.0
    %vm197 = vcmp.ge.f32.partialorder %v69, 0.0
    %vm198 = vcmp.ge.f32.partialorder %v70, 0.0
    %vm199 = vcmp.ge.f32.partialorder %v71, 0.0
    %vm200 = vcmp.ge.f32.partialorder %v72, 0.0
    %vm201 = vcmp.ge.f32.partialorder %v73, 0.0
    %vm202 = vcmp.ge.f32.partialorder %v74, 0.0
    %vm203 = vcmp.ge.f32.partialorder %v75, 0.0
    %vm204 = vcmp.ge.f32.partialorder %v76, 0.0
    %vm205 = vcmp.ge.f32.partialorder %v77, 0.0
    %vm206 = vcmp.ge.f32.partialorder %v78, 0.0
    %vm207 = vcmp.ge.f32.partialorder %v79, 0.0
    %vm208 = vcmp.ge.f32.partialorder %v80, 0.0
    %vm209 = vcmp.ge.f32.partialorder %v81, 0.0
    %vm210 = vcmp.ge.f32.partialorder %v82, 0.0
    %vm211 = vcmp.ge.f32.partialorder %v83, 0.0
    %vm212 = vcmp.ge.f32.partialorder %v84, 0.0
    %vm213 = vcmp.ge.f32.partialorder %v85, 0.0
    %vm214 = vcmp.ge.f32.partialorder %v86, 0.0
    %vm215 = vcmp.ge.f32.partialorder %v87, 0.0
    %vm216 = vcmp.ge.f32.partialorder %v88, 0.0
    %vm217 = vcmp.ge.f32.partialorder %v89, 0.0
    %vm218 = vcmp.ge.f32.partialorder %v90, 0.0
    %vm219 = vcmp.ge.f32.partialorder %v91, 0.0
    %vm220 = vcmp.ge.f32.partialorder %v92, 0.0
    %vm221 = vcmp.ge.f32.partialorder %v93, 0.0
    %vm222 = vcmp.ge.f32.partialorder %v94, 0.0
    %vm223 = vcmp.ge.f32.partialorder %v95, 0.0
    %vm224 = vcmp.ge.f32.partialorder %v96, 0.0
    %vm225 = vcmp.ge.f32.partialorder %v97, 0.0
    %vm226 = vcmp.ge.f32.partialorder %v98, 0.0
    %vm227 = vcmp.ge.f32.partialorder %v99, 0.0
    %vm228 = vcmp.ge.f32.partialorder %v100, 0.0
    %vm229 = vcmp.ge.f32.partialorder %v101, 0.0
    %vm230 = vcmp.ge.f32.partialorder %v102, 0.0
    %vm231 = vcmp.ge.f32.partialorder %v103, 0.0
    %vm232 = vcmp.ge.f32.partialorder %v104, 0.0
    %vm233 = vcmp.ge.f32.partialorder %v105, 0.0
    %vm234 = vcmp.ge.f32.partialorder %v106, 0.0
    %vm235 = vcmp.ge.f32.partialorder %v107, 0.0
    %vm236 = vcmp.ge.f32.partialorder %v108, 0.0
    %vm237 = vcmp.ge.f32.partialorder %v109, 0.0
    %vm238 = vcmp.ge.f32.partialorder %v110, 0.0
    %vm239 = vcmp.ge.f32.partialorder %v111, 0.0
    %vm240 = vcmp.ge.f32.partialorder %v112, 0.0
    %vm241 = vcmp.ge.f32.partialorder %v113, 0.0
    %vm242 = vcmp.ge.f32.partialorder %v114, 0.0
    %vm243 = vcmp.ge.f32.partialorder %v115, 0.0
    %vm244 = vcmp.ge.f32.partialorder %v116, 0.0
    %vm245 = vcmp.ge.f32.partialorder %v117, 0.0
    %vm246 = vcmp.ge.f32.partialorder %v118, 0.0
    %vm247 = vcmp.ge.f32.partialorder %v119, 0.0
    %vm248 = vcmp.ge.f32.partialorder %v120, 0.0
    %vm249 = vcmp.ge.f32.partialorder %v121, 0.0
    %vm250 = vcmp.ge.f32.partialorder %v122, 0.0
    %vm251 = vcmp.ge.f32.partialorder %v123, 0.0
    %vm252 = vcmp.ge.f32.partialorder %v124, 0.0
    %vm253 = vcmp.ge.f32.partialorder %v125, 0.0
    %vm254 = vcmp.ge.f32.partialorder %v126, 0.0
    %vm255 = vcmp.ge.f32.partialorder %v127, 0.0
    %vm256 = vcmp.ge.f32.partialorder %v128, 0.0
    %vm257 = vcmp.ge.f32.partialorder %v129, 0.0
    %vm258 = vcmp.ge.f32.partialorder %v130, 0.0
    %vm259 = vcmp.ge.f32.partialorder %v131, 0.0
    %vm260 = vcmp.ge.f32.partialorder %v132, 0.0
    %vm261 = vcmp.ge.f32.partialorder %v133, 0.0
    %vm262 = vcmp.ge.f32.partialorder %v134, 0.0
    %vm263 = vcmp.ge.f32.partialorder %v135, 0.0
    %vm264 = vcmp.ge.f32.partialorder %v136, 0.0
    %vm265 = vcmp.ge.f32.partialorder %v137, 0.0
    %vm266 = vcmp.ge.f32.partialorder %v138, 0.0
    %vm267 = vcmp.ge.f32.partialorder %v139, 0.0
    %vm268 = vcmp.ge.f32.partialorder %v140, 0.0
    %vm269 = vcmp.ge.f32.partialorder %v141, 0.0
    %vm270 = vcmp.ge.f32.partialorder %v142, 0.0
    %vm271 = vcmp.ge.f32.partialorder %v143, 0.0
    %vm272 = vcmp.ge.f32.partialorder %v144, 0.0
    %vm273 = vcmp.ge.f32.partialorder %v145, 0.0
    %vm274 = vcmp.ge.f32.partialorder %v146, 0.0
    %vm275 = vcmp.ge.f32.partialorder %v147, 0.0
    %vm276 = vcmp.ge.f32.partialorder %v148, 0.0
    %vm277 = vcmp.ge.f32.partialorder %v149, 0.0
    %vm278 = vcmp.ge.f32.partialorder %v150, 0.0
    %vm279 = vcmp.ge.f32.partialorder %v151, 0.0
    %vm280 = vcmp.ge.f32.partialorder %v152, 0.0
    %v281 = vmul.f32 %v25, 0.1
    %v282 = vmul.f32 %v26, 0.1
    %v283 = vmul.f32 %v27, 0.1
    %v284 = vmul.f32 %v28, 0.1
    %v285 = vmul.f32 %v29, 0.1
    %v286 = vmul.f32 %v30, 0.1
    %v287 = vmul.f32 %v31, 0.1
    %v288 = vmul.f32 %v32, 0.1
    %v289 = vmul.f32 %v33, 0.1
    %v290 = vmul.f32 %v34, 0.1
    %v291 = vmul.f32 %v35, 0.1
    %v292 = vmul.f32 %v36, 0.1
    %v293 = vmul.f32 %v37, 0.1
    %v294 = vmul.f32 %v38, 0.1
    %v295 = vmul.f32 %v39, 0.1
    %v296 = vmul.f32 %v40, 0.1
    %v297 = vmul.f32 %v41, 0.1
    %v298 = vmul.f32 %v42, 0.1
    %v299 = vmul.f32 %v43, 0.1
    %v300 = vmul.f32 %v44, 0.1
    %v301 = vmul.f32 %v45, 0.1
    %v302 = vmul.f32 %v46, 0.1
    %v303 = vmul.f32 %v47, 0.1
    %v304 = vmul.f32 %v48, 0.1
    %v305 = vmul.f32 %v49, 0.1
    %v306 = vmul.f32 %v50, 0.1
    %v307 = vmul.f32 %v51, 0.1
    %v308 = vmul.f32 %v52, 0.1
    %v309 = vmul.f32 %v53, 0.1
    %v310 = vmul.f32 %v54, 0.1
    %v311 = vmul.f32 %v55, 0.1
    %v312 = vmul.f32 %v56, 0.1
    %v313 = vmul.f32 %v57, 0.1
    %v314 = vmul.f32 %v58, 0.1
    %v315 = vmul.f32 %v59, 0.1
    %v316 = vmul.f32 %v60, 0.1
    %v317 = vmul.f32 %v61, 0.1
    %v318 = vmul.f32 %v62, 0.1
    %v319 = vmul.f32 %v63, 0.1
    %v320 = vmul.f32 %v64, 0.1
    %v321 = vmul.f32 %v65, 0.1
    %v322 = vmul.f32 %v66, 0.1
    %v323 = vmul.f32 %v67, 0.1
    %v324 = vmul.f32 %v68, 0.1
    %v325 = vmul.f32 %v69, 0.1
    %v326 = vmul.f32 %v70, 0.1
    %v327 = vmul.f32 %v71, 0.1
    %v328 = vmul.f32 %v72, 0.1
    %v329 = vmul.f32 %v73, 0.1
    %v330 = vmul.f32 %v74, 0.1
    %v331 = vmul.f32 %v75, 0.1
    %v332 = vmul.f32 %v76, 0.1
    %v333 = vmul.f32 %v77, 0.1
    %v334 = vmul.f32 %v78, 0.1
    %v335 = vmul.f32 %v79, 0.1
    %v336 = vmul.f32 %v80, 0.1
    %v337 = vmul.f32 %v81, 0.1
    %v338 = vmul.f32 %v82, 0.1
    %v339 = vmul.f32 %v83, 0.1
    %v340 = vmul.f32 %v84, 0.1
    %v341 = vmul.f32 %v85, 0.1
    %v342 = vmul.f32 %v86, 0.1
    %v343 = vmul.f32 %v87, 0.1
    %v344 = vmul.f32 %v88, 0.1
    %v345 = vmul.f32 %v89, 0.1
    %v346 = vmul.f32 %v90, 0.1
    %v347 = vmul.f32 %v91, 0.1
    %v348 = vmul.f32 %v92, 0.1
    %v349 = vmul.f32 %v93, 0.1
    %v350 = vmul.f32 %v94, 0.1
    %v351 = vmul.f32 %v95, 0.1
    %v352 = vmul.f32 %v96, 0.1
    %v353 = vmul.f32 %v97, 0.1
    %v354 = vmul.f32 %v98, 0.1
    %v355 = vmul.f32 %v99, 0.1
    %v356 = vmul.f32 %v100, 0.1
    %v357 = vmul.f32 %v101, 0.1
    %v358 = vmul.f32 %v102, 0.1
    %v359 = vmul.f32 %v103, 0.1
    %v360 = vmul.f32 %v104, 0.1
    %v361 = vmul.f32 %v105, 0.1
    %v362 = vmul.f32 %v106, 0.1
    %v363 = vmul.f32 %v107, 0.1
    %v364 = vmul.f32 %v108, 0.1
    %v365 = vmul.f32 %v109, 0.1
    %v366 = vmul.f32 %v110, 0.1
    %v367 = vmul.f32 %v111, 0.1
    %v368 = vmul.f32 %v112, 0.1
    %v369 = vmul.f32 %v113, 0.1
    %v370 = vmul.f32 %v114, 0.1
    %v371 = vmul.f32 %v115, 0.1
    %v372 = vmul.f32 %v116, 0.1
    %v373 = vmul.f32 %v117, 0.1
    %v374 = vmul.f32 %v118, 0.1
    %v375 = vmul.f32 %v119, 0.1
    %v376 = vmul.f32 %v120, 0.1
    %v377 = vmul.f32 %v121, 0.1
    %v378 = vmul.f32 %v122, 0.1
    %v379 = vmul.f32 %v123, 0.1
    %v380 = vmul.f32 %v124, 0.1
    %v381 = vmul.f32 %v125, 0.1
    %v382 = vmul.f32 %v126, 0.1
    %v383 = vmul.f32 %v127, 0.1
    %v384 = vmul.f32 %v128, 0.1
    %v385 = vmul.f32 %v129, 0.1
    %v386 = vmul.f32 %v130, 0.1
    %v387 = vmul.f32 %v131, 0.1
    %v388 = vmul.f32 %v132, 0.1
    %v389 = vmul.f32 %v133, 0.1
    %v390 = vmul.f32 %v134, 0.1
    %v391 = vmul.f32 %v135, 0.1
    %v392 = vmul.f32 %v136, 0.1
    %v393 = vmul.f32 %v137, 0.1
    %v394 = vmul.f32 %v138, 0.1
    %v395 = vmul.f32 %v139, 0.1
    %v396 = vmul.f32 %v140, 0.1
    %v397 = vmul.f32 %v141, 0.1
    %v398 = vmul.f32 %v142, 0.1
    %v399 = vmul.f32 %v143, 0.1
    %v400 = vmul.f32 %v144, 0.1
    %v401 = vmul.f32 %v145, 0.1
    %v402 = vmul.f32 %v146, 0.1
    %v403 = vmul.f32 %v147, 0.1
    %v404 = vmul.f32 %v148, 0.1
    %v405 = vmul.f32 %v149, 0.1
    %v406 = vmul.f32 %v150, 0.1
    %v407 = vmul.f32 %v151, 0.1
    %v408 = vmul.f32 %v152, 0.1
    %v409 = vsel %vm153, %v25, %v281
    %v410 = vsel %vm154, %v26, %v282
    %v411 = vsel %vm155, %v27, %v283
    %v412 = vsel %vm156, %v28, %v284
    %v413 = vsel %vm157, %v29, %v285
    %v414 = vsel %vm158, %v30, %v286
    %v415 = vsel %vm159, %v31, %v287
    %v416 = vsel %vm160, %v32, %v288
    %v417 = vsel %vm161, %v33, %v289
    %v418 = vsel %vm162, %v34, %v290
    %v419 = vsel %vm163, %v35, %v291
    %v420 = vsel %vm164, %v36, %v292
    %v421 = vsel %vm165, %v37, %v293
    %v422 = vsel %vm166, %v38, %v294
    %v423 = vsel %vm167, %v39, %v295
    %v424 = vsel %vm168, %v40, %v296
    %v425 = vsel %vm169, %v41, %v297
    %v426 = vsel %vm170, %v42, %v298
    %v427 = vsel %vm171, %v43, %v299
    %v428 = vsel %vm172, %v44, %v300
    %v429 = vsel %vm173, %v45, %v301
    %v430 = vsel %vm174, %v46, %v302
    %v431 = vsel %vm175, %v47, %v303
    %v432 = vsel %vm176, %v48, %v304
    %v433 = vsel %vm177, %v49, %v305
    %v434 = vsel %vm178, %v50, %v306
    %v435 = vsel %vm179, %v51, %v307
    %v436 = vsel %vm180, %v52, %v308
    %v437 = vsel %vm181, %v53, %v309
    %v438 = vsel %vm182, %v54, %v310
    %v439 = vsel %vm183, %v55, %v311
    %v440 = vsel %vm184, %v56, %v312
    %v441 = vsel %vm185, %v57, %v313
    %v442 = vsel %vm186, %v58, %v314
    %v443 = vsel %vm187, %v59, %v315
    %v444 = vsel %vm188, %v60, %v316
    %v445 = vsel %vm189, %v61, %v317
    %v446 = vsel %vm190, %v62, %v318
    %v447 = vsel %vm191, %v63, %v319
    %v448 = vsel %vm192, %v64, %v320
    %v449 = vsel %vm193, %v65, %v321
    %v450 = vsel %vm194, %v66, %v322
    %v451 = vsel %vm195, %v67, %v323
    %v452 = vsel %vm196, %v68, %v324
    %v453 = vsel %vm197, %v69, %v325
    %v454 = vsel %vm198, %v70, %v326
    %v455 = vsel %vm199, %v71, %v327
    %v456 = vsel %vm200, %v72, %v328
    %v457 = vsel %vm201, %v73, %v329
    %v458 = vsel %vm202, %v74, %v330
    %v459 = vsel %vm203, %v75, %v331
    %v460 = vsel %vm204, %v76, %v332
    %v461 = vsel %vm205, %v77, %v333
    %v462 = vsel %vm206, %v78, %v334
    %v463 = vsel %vm207, %v79, %v335
    %v464 = vsel %vm208, %v80, %v336
    %v465 = vsel %vm209, %v81, %v337
    %v466 = vsel %vm210, %v82, %v338
    %v467 = vsel %vm211, %v83, %v339
    %v468 = vsel %vm212, %v84, %v340
    %v469 = vsel %vm213, %v85, %v341
    %v470 = vsel %vm214, %v86, %v342
    %v471 = vsel %vm215, %v87, %v343
    %v472 = vsel %vm216, %v88, %v344
    %v473 = vsel %vm217, %v89, %v345
    %v474 = vsel %vm218, %v90, %v346
    %v475 = vsel %vm219, %v91, %v347
    %v476 = vsel %vm220, %v92, %v348
    %v477 = vsel %vm221, %v93, %v349
    %v478 = vsel %vm222, %v94, %v350
    %v479 = vsel %vm223, %v95, %v351
    %v480 = vsel %vm224, %v96, %v352
    %v481 = vsel %vm225, %v97, %v353
    %v482 = vsel %vm226, %v98, %v354
    %v483 = vsel %vm227, %v99, %v355
    %v484 = vsel %vm228, %v100, %v356
    %v485 = vsel %vm229, %v101, %v357
    %v486 = vsel %vm230, %v102, %v358
    %v487 = vsel %vm231, %v103, %v359
    %v488 = vsel %vm232, %v104, %v360
    %v489 = vsel %vm233, %v105, %v361
    %v490 = vsel %vm234, %v106, %v362
    %v491 = vsel %vm235, %v107, %v363
    %v492 = vsel %vm236, %v108, %v364
    %v493 = vsel %vm237, %v109, %v365
    %v494 = vsel %vm238, %v110, %v366
    %v495 = vsel %vm239, %v111, %v367
    %v496 = vsel %vm240, %v112, %v368
    %v497 = vsel %vm241, %v113, %v369
    %v498 = vsel %vm242, %v114, %v370
    %v499 = vsel %vm243, %v115, %v371
    %v500 = vsel %vm244, %v116, %v372
    %v501 = vsel %vm245, %v117, %v373
    %v502 = vsel %vm246, %v118, %v374
    %v503 = vsel %vm247, %v119, %v375
    %v504 = vsel %vm248, %v120, %v376
    %v505 = vsel %vm249, %v121, %v377
    %v506 = vsel %vm250, %v122, %v378
    %v507 = vsel %vm251, %v123, %v379
    %v508 = vsel %vm252, %v124, %v380
    %v509 = vsel %vm253, %v125, %v381
    %v510 = vsel %vm254, %v126, %v382
    %v511 = vsel %vm255, %v127, %v383
    %v512 = vsel %vm256, %v128, %v384
    %v513 = vsel %vm257, %v129, %v385
    %v514 = vsel %vm258, %v130, %v386
    %v515 = vsel %vm259, %v131, %v387
    %v516 = vsel %vm260, %v132, %v388
    %v517 = vsel %vm261, %v133, %v389
    %v518 = vsel %vm262, %v134, %v390
    %v519 = vsel %vm263, %v135, %v391
    %v520 = vsel %vm264, %v136, %v392
    %v521 = vsel %vm265, %v137, %v393
    %v522 = vsel %vm266, %v138, %v394
    %v523 = vsel %vm267, %v139, %v395
    %v524 = vsel %vm268, %v140, %v396
    %v525 = vsel %vm269, %v141, %v397
    %v526 = vsel %vm270, %v142, %v398
    %v527 = vsel %vm271, %v143, %v399
    %v528 = vsel %vm272, %v144, %v400
    %v529 = vsel %vm273, %v145, %v401
    %v530 = vsel %vm274, %v146, %v402
    %v531 = vsel %vm275, %v147, %v403
    %v532 = vsel %vm276, %v148, %v404
    %v533 = vsel %vm277, %v149, %v405
    %v534 = vsel %vm278, %v150, %v406
    %v535 = vsel %vm279, %v151, %v407
    %v536 = vsel %vm280, %v152, %v408
    %537 = vst [vmem:[#allocation5] sm:$0xff] %v409
    %538 = vst [vmem:[#allocation5 + $0x8] sm:$0xff] %v410
    %539 = vst [vmem:[#allocation5 + $0x10] sm:$0xff] %v411
    %540 = vst [vmem:[#allocation5 + $0x18] sm:$0xff] %v412
    %541 = vst [vmem:[#allocation5 + $0x20] sm:$0xff] %v413
    %542 = vst [vmem:[#allocation5 + $0x28] sm:$0xff] %v414
    %543 = vst [vmem:[#allocation5 + $0x30] sm:$0xff] %v415
    %544 = vst [vmem:[#allocation5 + $0x38] sm:$0xff] %v416
    %545 = vst [vmem:[#allocation5 + $0x40] sm:$0xff] %v417
    %546 = vst [vmem:[#allocation5 + $0x48] sm:$0xff] %v418
    %547 = vst [vmem:[#allocation5 + $0x50] sm:$0xff] %v419
    %548 = vst [vmem:[#allocation5 + $0x58] sm:$0xff] %v420
    %549 = vst [vmem:[#allocation5 + $0x60] sm:$0xff] %v421
    %550 = vst [vmem:[#allocation5 + $0x68] sm:$0xff] %v422
    %551 = vst [vmem:[#allocation5 + $0x70] sm:$0xff] %v423
    %552 = vst [vmem:[#allocation5 + $0x78] sm:$0xff] %v424
    %553 = vst [vmem:[#allocation5 + $0x80] sm:$0xff] %v425
    %554 = vst [vmem:[#allocation5 + $0x88] sm:$0xff] %v426
    %555 = vst [vmem:[#allocation5 + $0x90] sm:$0xff] %v427
    %556 = vst [vmem:[#allocation5 + $0x98] sm:$0xff] %v428
    %557 = vst [vmem:[#allocation5 + $0xa0] sm:$0xff] %v429
    %558 = vst [vmem:[#allocation5 + $0xa8] sm:$0xff] %v430
    %559 = vst [vmem:[#allocation5 + $0xb0] sm:$0xff] %v431
    %560 = vst [vmem:[#allocation5 + $0xb8] sm:$0xff] %v432
    %561 = vst [vmem:[#allocation5 + $0xc0] sm:$0xff] %v433
    %562 = vst [vmem:[#allocation5 + $0xc8] sm:$0xff] %v434
    %563 = vst [vmem:[#allocation5 + $0xd0] sm:$0xff] %v435
    %564 = vst [vmem:[#allocation5 + $0xd8] sm:$0xff] %v436
    %565 = vst [vmem:[#allocation5 + $0xe0] sm:$0xff] %v437
    %566 = vst [vmem:[#allocation5 + $0xe8] sm:$0xff] %v438
    %567 = vst [vmem:[#allocation5 + $0xf0] sm:$0xff] %v439
    %568 = vst [vmem:[#allocation5 + $0xf8] sm:$0xff] %v440
    %569 = vst [vmem:[#allocation5 + $0x100] sm:$0xff] %v441
    %570 = vst [vmem:[#allocation5 + $0x108] sm:$0xff] %v442
    %571 = vst [vmem:[#allocation5 + $0x110] sm:$0xff] %v443
    %572 = vst [vmem:[#allocation5 + $0x118] sm:$0xff] %v444
    %573 = vst [vmem:[#allocation5 + $0x120] sm:$0xff] %v445
    %574 = vst [vmem:[#allocation5 + $0x128] sm:$0xff] %v446
    %575 = vst [vmem:[#allocation5 + $0x130] sm:$0xff] %v447
    %576 = vst [vmem:[#allocation5 + $0x138] sm:$0xff] %v448
    %577 = vst [vmem:[#allocation5 + $0x140] sm:$0xff] %v449
    %578 = vst [vmem:[#allocation5 + $0x148] sm:$0xff] %v450
    %579 = vst [vmem:[#allocation5 + $0x150] sm:$0xff] %v451
    %580 = vst [vmem:[#allocation5 + $0x158] sm:$0xff] %v452
    %581 = vst [vmem:[#allocation5 + $0x160] sm:$0xff] %v453
    %582 = vst [vmem:[#allocation5 + $0x168] sm:$0xff] %v454
    %583 = vst [vmem:[#allocation5 + $0x170] sm:$0xff] %v455
    %584 = vst [vmem:[#allocation5 + $0x178] sm:$0xff] %v456
    %585 = vst [vmem:[#allocation5 + $0x180] sm:$0xff] %v457
    %586 = vst [vmem:[#allocation5 + $0x188] sm:$0xff] %v458
    %587 = vst [vmem:[#allocation5 + $0x190] sm:$0xff] %v459
    %588 = vst [vmem:[#allocation5 + $0x198] sm:$0xff] %v460
    %589 = vst [vmem:[#allocation5 + $0x1a0] sm:$0xff] %v461
    %590 = vst [vmem:[#allocation5 + $0x1a8] sm:$0xff] %v462
    %591 = vst [vmem:[#allocation5 + $0x1b0] sm:$0xff] %v463
    %592 = vst [vmem:[#allocation5 + $0x1b8] sm:$0xff] %v464
    %593 = vst [vmem:[#allocation5 + $0x1c0] sm:$0xff] %v465
    %594 = vst [vmem:[#allocation5 + $0x1c8] sm:$0xff] %v466
    %595 = vst [vmem:[#allocation5 + $0x1d0] sm:$0xff] %v467
    %596 = vst [vmem:[#allocation5 + $0x1d8] sm:$0xff] %v468
    %597 = vst [vmem:[#allocation5 + $0x1e0] sm:$0xff] %v469
    %598 = vst [vmem:[#allocation5 + $0x1e8] sm:$0xff] %v470
    %599 = vst [vmem:[#allocation5 + $0x1f0] sm:$0xff] %v471
    %600 = vst [vmem:[#allocation5 + $0x1f8] sm:$0xff] %v472
    %601 = vst [vmem:[#allocation5 + $0x200] sm:$0xff] %v473
    %602 = vst [vmem:[#allocation5 + $0x208] sm:$0xff] %v474
    %603 = vst [vmem:[#allocation5 + $0x210] sm:$0xff] %v475
    %604 = vst [vmem:[#allocation5 + $0x218] sm:$0xff] %v476
    %605 = vst [vmem:[#allocation5 + $0x220] sm:$0xff] %v477
    %606 = vst [vmem:[#allocation5 + $0x228] sm:$0xff] %v478
    %607 = vst [vmem:[#allocation5 + $0x230] sm:$0xff] %v479
    %608 = vst [vmem:[#allocation5 + $0x238] sm:$0xff] %v480
    %609 = vst [vmem:[#allocation5 + $0x240] sm:$0xff] %v481
    %610 = vst [vmem:[#allocation5 + $0x248] sm:$0xff] %v482
    %611 = vst [vmem:[#allocation5 + $0x250] sm:$0xff] %v483
    %612 = vst [vmem:[#allocation5 + $0x258] sm:$0xff] %v484
    %613 = vst [vmem:[#allocation5 + $0x260] sm:$0xff] %v485
    %614 = vst [vmem:[#allocation5 + $0x268] sm:$0xff] %v486
    %615 = vst [vmem:[#allocation5 + $0x270] sm:$0xff] %v487
    %616 = vst [vmem:[#allocation5 + $0x278] sm:$0xff] %v488
    %617 = vst [vmem:[#allocation5 + $0x280] sm:$0xff] %v489
    %618 = vst [vmem:[#allocation5 + $0x288] sm:$0xff] %v490
    %619 = vst [vmem:[#allocation5 + $0x290] sm:$0xff] %v491
    %620 = vst [vmem:[#allocation5 + $0x298] sm:$0xff] %v492
    %621 = vst [vmem:[#allocation5 + $0x2a0] sm:$0xff] %v493
    %622 = vst [vmem:[#allocation5 + $0x2a8] sm:$0xff] %v494
    %623 = vst [vmem:[#allocation5 + $0x2b0] sm:$0xff] %v495
    %624 = vst [vmem:[#allocation5 + $0x2b8] sm:$0xff] %v496
    %625 = vst [vmem:[#allocation5 + $0x2c0] sm:$0xff] %v497
    %626 = vst [vmem:[#allocation5 + $0x2c8] sm:$0xff] %v498
    %627 = vst [vmem:[#allocation5 + $0x2d0] sm:$0xff] %v499
    %628 = vst [vmem:[#allocation5 + $0x2d8] sm:$0xff] %v500
    %629 = vst [vmem:[#allocation5 + $0x2e0] sm:$0xff] %v501
    %630 = vst [vmem:[#allocation5 + $0x2e8] sm:$0xff] %v502
    %631 = vst [vmem:[#allocation5 + $0x2f0] sm:$0xff] %v503
    %632 = vst [vmem:[#allocation5 + $0x2f8] sm:$0xff] %v504
    %633 = vst [vmem:[#allocation5 + $0x300] sm:$0xff] %v505
    %634 = vst [vmem:[#allocation5 + $0x308] sm:$0xff] %v506
    %635 = vst [vmem:[#allocation5 + $0x310] sm:$0xff] %v507
    %636 = vst [vmem:[#allocation5 + $0x318] sm:$0xff] %v508
    %637 = vst [vmem:[#allocation5 + $0x320] sm:$0xff] %v509
    %638 = vst [vmem:[#allocation5 + $0x328] sm:$0xff] %v510
    %639 = vst [vmem:[#allocation5 + $0x330] sm:$0xff] %v511
    %640 = vst [vmem:[#allocation5 + $0x338] sm:$0xff] %v512
    %641 = vst [vmem:[#allocation5 + $0x340] sm:$0xff] %v513
    %642 = vst [vmem:[#allocation5 + $0x348] sm:$0xff] %v514
    %643 = vst [vmem:[#allocation5 + $0x350] sm:$0xff] %v515
    %644 = vst [vmem:[#allocation5 + $0x358] sm:$0xff] %v516
    %645 = vst [vmem:[#allocation5 + $0x360] sm:$0xff] %v517
    %646 = vst [vmem:[#allocation5 + $0x368] sm:$0xff] %v518
    %647 = vst [vmem:[#allocation5 + $0x370] sm:$0xff] %v519
    %648 = vst [vmem:[#allocation5 + $0x378] sm:$0xff] %v520
    %649 = vst [vmem:[#allocation5 + $0x380] sm:$0xff] %v521
    %650 = vst [vmem:[#allocation5 + $0x388] sm:$0xff] %v522
    %651 = vst [vmem:[#allocation5 + $0x390] sm:$0xff] %v523
    %652 = vst [vmem:[#allocation5 + $0x398] sm:$0xff] %v524
    %653 = vst [vmem:[#allocation5 + $0x3a0] sm:$0xff] %v525
    %654 = vst [vmem:[#allocation5 + $0x3a8] sm:$0xff] %v526
    %655 = vst [vmem:[#allocation5 + $0x3b0] sm:$0xff] %v527
    %656 = vst [vmem:[#allocation5 + $0x3b8] sm:$0xff] %v528
    %657 = vst [vmem:[#allocation5 + $0x3c0] sm:$0xff] %v529
    %658 = vst [vmem:[#allocation5 + $0x3c8] sm:$0xff] %v530
    %659 = vst [vmem:[#allocation5 + $0x3d0] sm:$0xff] %v531
    %660 = vst [vmem:[#allocation5 + $0x3d8] sm:$0xff] %v532
    %661 = vst [vmem:[#allocation5 + $0x3e0] sm:$0xff] %v533
    %662 = vst [vmem:[#allocation5 + $0x3e8] sm:$0xff] %v534
    %663 = vst [vmem:[#allocation5 + $0x3f0] sm:$0xff] %v535
    %664 = vst [vmem:[#allocation5 + $0x3f8] sm:$0xff] %v536
    // Predicated region
    $region10: #{tpu_custom_call.1} parent=1 // pred_check
      _
    $region11: #{tpu_custom_call.1} parent=1 // pred_check_branch
      %666 = sbr.rel (0) target = $region13
    $region12: #{tpu_custom_call.1} parent=1 // pred_region
      %668 = vsyncadd [#allocation4], 0
      %s669 = sshll.u32 [#allocation5], 4
      %s670 = int_to_ptr.vmem [resolvable:$true] %s669
      %s671 = sshll.u32 %s1, 4
      %s672 = int_to_ptr.hbm [resolvable:$true] %s671
      %677 = dma.vmem_to_hbm [thread:$0]  %s670, 16384, %s672, [#allocation4], 8192, 8192, 512
    $region13: #{tpu_custom_call.1} parent=1 // pred_fallthru
      _
    // Predicated region
    $region14: #{tpu_custom_call.1} parent=1 // pred_check
      _
    $region15: #{tpu_custom_call.1} parent=1 // pred_check_branch
      %679 = sbr.rel (0) target = $region17
    $region16: #{tpu_custom_call.1} parent=1 // pred_region
      %681 = dma.done [#allocation4], 16384
    $region17: #{tpu_custom_call.1} parent=1 // pred_fallthru
      _
    %682 = vsyncpa [#allocation3], 1
    %683 = vsyncpa [#allocation4], 1

</llo_original>
